<compile_context>
chip_gen: v6e
topology: v6e:2x2x1
jax: 0.10.0
libtpu: 0.0.40
codegen_flags: <defaults>
</compile_context>

<pallas_src>
import jax
import jax.numpy as jnp
from jax.experimental import pallas as pl
from jax.experimental.pallas import tpu as pltpu

_LANE = 128


def sig_t2_kernel(w_ref, out_ref):
    w = w_ref[...]                                    # (C, TN) f32 column tile
    # numerically-stable softmax over axis -2 (per-column), matching
    # torch.softmax(w, dim=-2); the softmax axis is fully resident in VMEM.
    m = jnp.max(w, axis=-2, keepdims=True)            # (1, TN)
    e = jnp.exp(w - m)                                # (C, TN)
    denom = jnp.sum(e, axis=-2, keepdims=True)        # (1, TN)
    # exact reciprocal, 0.5 scale folded in: a (1, TN) op -> effectively free
    # in a memory-bound kernel, and keeps exact column-stochasticity.
    s = e * (0.5 / denom)                             # (C, TN) = 0.5 * softmax

    C, TN = w.shape
    col0 = pl.program_id(0) * TN                      # column offset of tile
    row = jax.lax.broadcasted_iota(jnp.int32, (C, 1), 0)           # (C, 1)
    col = jax.lax.broadcasted_iota(jnp.int32, (1, TN), 1) + col0   # (1, TN)
    # broadcasted compare -> single (C, TN) bool mask; 0.5 * I via one select
    out_ref[...] = jnp.where(row == col, s + 0.5, s)


def _vmem_limits():
    # derive limits from the actual part so v7x (64 MiB/TC) keeps headroom
    # while v5e/v6e (128 MiB) get wide tiles.
    try:
        cap = int(pltpu.get_tpu_info().vmem_capacity_bytes)
    except Exception:
        cap = 64 * 1024 * 1024                         # conservative (v7x per-TC)
    vmem_limit = min((cap * 3) // 4, 96 * 1024 * 1024) # 48 MiB on v7x, 96 MiB on v5e/v6e
    tile_budget = (vmem_limit * 3) // 5                # headroom for compiler scratch
    return vmem_limit, tile_budget


def _choose_tn(C, tile_budget):
    # double-buffered in + out tiles: ~ 2 bufs * 2 arrays * C * TN * 4 B
    max_tn = (tile_budget // (16 * C)) // _LANE * _LANE
    if max_tn < _LANE:
        # TODO(synk): for extremely large C (softmax axis no longer fits VMEM)
        # add a two-pass / online-softmax fallback that also tiles axis -2.
        raise ValueError(
            f"num_classes={C} too large for a column-resident softmax tile")
    lane_tiles = pl.cdiv(C, _LANE)
    if lane_tiles >= 2:
        # cap TN so there are >= 2 column tiles -> both v7x TensorCores get work
        max_tn = min(max_tn, pl.cdiv(lane_tiles, 2) * _LANE)
    return max(_LANE, min(max_tn, lane_tiles * _LANE))


def sig_t2_forward(w):
    C = w.shape[0]
    vmem_limit, tile_budget = _vmem_limits()

    if C <= 256:
        # Tiny matrices: one full-array block, no padding, no partial tiles.
        # Launch overhead dominates here; fuse into the consumer in a real model.
        return pl.pallas_call(
            sig_t2_kernel,
            out_shape=jax.ShapeDtypeStruct((C, C), w.dtype),
            grid=(1,),
            in_specs=[pl.BlockSpec((C, C), lambda j: (0, 0))],
            out_specs=pl.BlockSpec((C, C), lambda j: (0, 0)),
            compiler_params=pltpu.CompilerParams(
                dimension_semantics=("arbitrary",),
                vmem_limit_bytes=vmem_limit,
            ),
        )(w)

    tn = _choose_tn(C, tile_budget)
    grid = (pl.cdiv(C, tn),)
    # No pad/slice: a partial last tile reads unspecified garbage columns; they
    # only pass through per-column math and their OOB writes are masked.
    # Invariant: this kernel must never reduce across columns.
    return pl.pallas_call(
        sig_t2_kernel,
        out_shape=jax.ShapeDtypeStruct((C, C), w.dtype),
        grid=grid,
        in_specs=[pl.BlockSpec((C, tn), lambda j: (0, j))],
        out_specs=pl.BlockSpec((C, tn), lambda j: (0, j)),
        compiler_params=pltpu.CompilerParams(
            dimension_semantics=("parallel",),
            vmem_limit_bytes=vmem_limit,
        ),
    )(w)


def make_params(num_classes, init=2.0, dtype=jnp.float32):
    # Deterministic init exactly as the torch module: w = -init * ones(C, C)
    return -init * jnp.ones((num_classes, num_classes), dtype=dtype)


def _reference(w):
    C = w.shape[0]
    return 0.5 * (jnp.eye(C, dtype=w.dtype) + jax.nn.softmax(w, axis=-2))


if __name__ == "__main__":
    key = jax.random.PRNGKey(0)
    k1, k2 = jax.random.split(key)

    # 1) Module-sized case (single-block fast path), exactly the torch init
    num_classes = 32
    w = make_params(num_classes, init=2.0)
    w = w + 0.01 * jax.random.normal(k1, w.shape, dtype=w.dtype)
    T = jax.block_until_ready(sig_t2_forward(w))
    assert T.shape == (num_classes, num_classes)
    assert jnp.allclose(T, _reference(w), atol=1e-6, rtol=1e-6), "mismatch (C=32)"

    # 2) Larger case exercising the tiled path with a partial (masked) tile
    C2 = 384
    w2 = make_params(C2, init=2.0)
    w2 = w2 + 0.01 * jax.random.normal(k2, w2.shape, dtype=w2.dtype)
    T2 = jax.block_until_ready(sig_t2_forward(w2))
    assert T2.shape == (C2, C2)
    assert jnp.allclose(T2, _reference(w2), atol=1e-6, rtol=1e-6), "mismatch (C=384)"

    print("KERNEL_OK")
</pallas_src>

<mosaic_0001>
module attributes {stable_mosaic.version = 11 : i64} {
  func.func @sig_t2_kernel(%arg0: i32, %arg1: memref<32x32xf32, #tpu.memory_space<vmem>>, %arg2: memref<32x32xf32, #tpu.memory_space<vmem>>) attributes {dimension_semantics = [#tpu.dimension_semantics<arbitrary>], iteration_bounds = array<i64: 1>, scalar_prefetch = 0 : i64, scratch_operands = 0 : i64, tpu.core_type = #tpu.core_type<tc>, window_params = [{pipeline_mode = #tpu.pipeline_mode<synchronous>, transform_indices = @transform_0, window_bounds = array<i64: 32, 32>}, {pipeline_mode = #tpu.pipeline_mode<synchronous>, transform_indices = @transform_1, window_bounds = array<i64: 32, 32>}]} {
    %c0 = arith.constant 0 : index
    %c0_0 = arith.constant 0 : index
    %0 = vector.load %arg1[%c0, %c0_0] : memref<32x32xf32, #tpu.memory_space<vmem>>, vector<32x32xf32>
    %cst = arith.constant dense<0xFF800000> : vector<32xf32>
    %1 = vector.multi_reduction <maximumf>, %0, %cst [0] : vector<32x32xf32> to vector<32xf32>
    %2 = vector.shape_cast %1 : vector<32xf32> to vector<1x32xf32>
    %3 = vector.broadcast %2 : vector<1x32xf32> to vector<32x32xf32>
    %4 = arith.subf %0, %3 : vector<32x32xf32>
    %5 = math.exp %4 : vector<32x32xf32>
    %cst_1 = arith.constant dense<0.000000e+00> : vector<32xf32>
    %6 = vector.multi_reduction <add>, %5, %cst_1 [0] : vector<32x32xf32> to vector<32xf32>
    %7 = vector.shape_cast %6 : vector<32xf32> to vector<1x32xf32>
    %cst_2 = arith.constant 5.000000e-01 : f32
    %8 = vector.broadcast %cst_2 : f32 to vector<1x32xf32>
    %9 = arith.divf %8, %7 : vector<1x32xf32>
    %10 = vector.broadcast %9 : vector<1x32xf32> to vector<32x32xf32>
    %11 = arith.mulf %5, %10 : vector<32x32xf32>
    %c32_i32 = arith.constant 32 : i32
    %12 = arith.muli %arg0, %c32_i32 : i32
    %13 = tpu.iota {dimensions = array<i32: 0>} : vector<32x1xi32>
    %14 = tpu.iota {dimensions = array<i32: 1>} : vector<1x32xi32>
    %15 = vector.broadcast %12 : i32 to vector<1x32xi32>
    %16 = arith.addi %14, %15 : vector<1x32xi32>
    %17 = vector.broadcast %13 : vector<32x1xi32> to vector<32x32xi32>
    %18 = vector.broadcast %16 : vector<1x32xi32> to vector<32x32xi32>
    %19 = arith.cmpi eq, %17, %18 : vector<32x32xi32>
    %cst_3 = arith.constant 5.000000e-01 : f32
    %20 = vector.broadcast %cst_3 : f32 to vector<32x32xf32>
    %21 = arith.addf %11, %20 : vector<32x32xf32>
    %22 = arith.select %19, %21, %11 : vector<32x32xi1>, vector<32x32xf32>
    %c0_4 = arith.constant 0 : index
    %c0_5 = arith.constant 0 : index
    %23 = vector.load %arg2[%c0_4, %c0_5] : memref<32x32xf32, #tpu.memory_space<vmem>>, vector<32x32xf32>
    tpu.vector_store %arg2[%c0_4, %c0_5], %22 {strides = array<i32>} : memref<32x32xf32, #tpu.memory_space<vmem>>, vector<32x32xf32>,
    return
  }
  func.func @transform_0(%arg0: i32) -> (i32, i32) {
    %c0_i32 = arith.constant 0 : i32
    %c0_i32_0 = arith.constant 0 : i32
    %c0_i32_1 = arith.constant 0 : i32
    return %c0_i32, %c0_i32_0 : i32, i32
  }
  func.func @transform_1(%arg0: i32) -> (i32, i32) {
    %c0_i32 = arith.constant 0 : i32
    %c0_i32_0 = arith.constant 0 : i32
    %c0_i32_1 = arith.constant 0 : i32
    return %c0_i32, %c0_i32_0 : i32, i32
  }
}

</mosaic_0001>

<llo_original>
// kernel: tpu_custom_call.1
$region0: #{tpu_custom_call.1}
  #allocation0 [shape = 'u32[]', space=smem, size = 0x4, offset = 0x4, fixed_abs, tag = 'smem constant byte address 0x4 - core index']
  #allocation1 [shape = 'u32[144,128]{1,0:T(1,128)}', space=vmem, size = 0x12000, scoped, tag = 'internal scratch']
  %s0 = inlined_call_operand.hbm [shape: f32[32,32], index: 0, kind: input, shape index: {}]
  %s1 = inlined_call_operand.hbm [shape: f32[32,32], index: 1, kind: output, shape index: {}]
  %s2 = sld [smem:[#allocation0]]
  $region18: #{tpu_custom_call.1} parent=0
    _
  %s4 = ssub.s32 1, %s2
  %s5 = scalar_select 0, %s4, %s2
  $region1: #{tpu_custom_call.1} parent=0
    #allocation2 [shape = 'u8[16384]{0}', space=vmem, size = 0x4000, scoped, tag = 'input window, operand 0, single buffered']
    #allocation3 [shape = 's32[1]{0}', space=sflag, size = 0x4, scoped, tag = 'scoped memory for tpu_custom_call.1']
    #allocation4 [shape = 's32[1]{0}', space=sflag, size = 0x4, scoped, tag = 'scoped memory for tpu_custom_call.1']
    #allocation5 [shape = 'u8[16384]{0}', space=vmem, size = 0x4000, scoped, tag = 'output window, operand 0, single buffered']
    %6 = vsyncpa [#allocation3], 0
    %7 = vsyncpa [#allocation4], 0
    // Predicated region
    $region2: #{tpu_custom_call.1} parent=1 // pred_check
      _
    $region3: #{tpu_custom_call.1} parent=1 // pred_check_branch
      %9 = sbr.rel (0) target = $region5
    $region4: #{tpu_custom_call.1} parent=1 // pred_region
      %s11 = ssub.s32 512, 512
      %12 = vsyncadd [#allocation3], %s11
      %s13 = sshll.u32 [#allocation2], 4
      %s14 = int_to_ptr.vmem [resolvable:$true] %s13
      %19 = dma.hbm_to_vmem [thread:$0]  %s0, 512, %s14, [#allocation3], 128, 128, 8
    $region5: #{tpu_custom_call.1} parent=1 // pred_fallthru
      _
    // Predicated region
    $region6: #{tpu_custom_call.1} parent=1 // pred_check
      _
    $region7: #{tpu_custom_call.1} parent=1 // pred_check_branch
      %21 = sbr.rel (0) target = $region9
    $region8: #{tpu_custom_call.1} parent=1 // pred_region
      %22 = dma.done [#allocation3], 512
    $region9: #{tpu_custom_call.1} parent=1 // pred_fallthru
      _
    %v23 = vld [vmem:[#allocation2] sm:$0xff]
    %v24 = vld [vmem:[#allocation2 + $0x8] sm:$0xff]
    %v25 = vld [vmem:[#allocation2 + $0x10] sm:$0xff]
    %v26 = vld [vmem:[#allocation2 + $0x18] sm:$0xff]
    %vm27 = vcmask 261120
    %v28 = vsel %vm27, %v23, -inf
    %v29 = vsel %vm27, %v24, -inf
    %v30 = vsel %vm27, %v25, -inf
    %v31 = vsel %vm27, %v26, -inf
    %v32 = vmax.f32 %v28, %v29
    %v33 = vmax.f32 %v30, %v31
    %v34 = vmax.f32 %v32, %v33
    %v35 = vrot.slane %v34, 4
    %v36 = vmax.f32 %v34, %v35
    %v37 = vrot.slane %v36, 2
    %v38 = vmax.f32 %v36, %v37
    %v39 = vrot.slane %v38, 1
    %v40 = vmax.f32 %v38, %v39
    %v41 = vsub.f32 %v23, %v40
    %v42 = vsub.f32 %v24, %v40
    %v43 = vsub.f32 %v25, %v40
    %v44 = vsub.f32 %v26, %v40
    %v45 = vmul.f32 %v41, 1.442695
    %v46 = vpow.pop %v45
    %v47 = vmul.f32 %v42, 1.442695
    %v48 = vpow.pop %v47
    %v49 = vmul.f32 %v43, 1.442695
    %v50 = vpow.pop %v49
    %v51 = vmul.f32 %v44, 1.442695
    %v52 = vpow.pop %v51
    %v53 = vsel %vm27, %v46, 0.0
    %v54 = vsel %vm27, %v48, 0.0
    %v55 = vadd.f32 %v53, %v54
    %v56 = vsel %vm27, %v50, 0.0
    %v57 = vadd.f32 %v55, %v56
    %v58 = vsel %vm27, %v52, 0.0
    %v59 = vadd.f32 %v57, %v58
    %v60 = vrot.slane %v59, 4
    %v61 = vadd.f32 %v59, %v60
    %v62 = vrot.slane %v61, 2
    %v63 = vadd.f32 %v61, %v62
    %v64 = vrot.slane %v63, 1
    %v65 = vadd.f32 %v63, %v64
    %v66 = vrcp.pop %v65
    %v67 = vmul.f32 0.5, %v66
    %v68 = vmul.f32 %v46, %v67
    %v69 = vmul.f32 %v48, %v67
    %v70 = vmul.f32 %v50, %v67
    %v71 = vmul.f32 %v52, %v67
    %s72 = smul.u32 0, 32
    %v73 = vlaneseq
    %v74 = vshrl.u32 %v73, 7
    %v75 = vadd.s32 %v74, 8
    %v76 = vadd.s32 %v74, 16
    %v77 = vadd.s32 %v74, 24
    %v78 = vlaneseq
    %v79 = vand.u32 %v78, 127
    %v80 = vstv %s72
    %v81 = vadd.s32 %v79, %v80
    %vm82 = vcmp.eq.s32.totalorder %v74, %v81
    %vm83 = vcmp.eq.s32.totalorder %v75, %v81
    %vm84 = vcmp.eq.s32.totalorder %v76, %v81
    %vm85 = vcmp.eq.s32.totalorder %v77, %v81
    %v86 = vadd.f32 %v68, 0.5
    %v87 = vadd.f32 %v69, 0.5
    %v88 = vadd.f32 %v70, 0.5
    %v89 = vadd.f32 %v71, 0.5
    %v90 = vsel %vm82, %v86, %v68
    %v91 = vsel %vm83, %v87, %v69
    %v92 = vsel %vm84, %v88, %v70
    %v93 = vsel %vm85, %v89, %v71
    %94 = vst.msk [vmem:[#allocation5] sm:$0xff] %vm27, %v90
    %95 = vst.msk [vmem:[#allocation5 + $0x8] sm:$0xff] %vm27, %v91
    %96 = vst.msk [vmem:[#allocation5 + $0x10] sm:$0xff] %vm27, %v92
    %97 = vst.msk [vmem:[#allocation5 + $0x18] sm:$0xff] %vm27, %v93
    // Predicated region
    $region10: #{tpu_custom_call.1} parent=1 // pred_check
      _
    $region11: #{tpu_custom_call.1} parent=1 // pred_check_branch
      %99 = sbr.rel (0) target = $region13
    $region12: #{tpu_custom_call.1} parent=1 // pred_region
      %s101 = ssub.s32 512, 512
      %102 = vsyncadd [#allocation4], %s101
      %s103 = sshll.u32 [#allocation5], 4
      %s104 = int_to_ptr.vmem [resolvable:$true] %s103
      %109 = dma.vmem_to_hbm [thread:$0]  %s104, 512, %s1, [#allocation4], 128, 128, 8
    $region13: #{tpu_custom_call.1} parent=1 // pred_fallthru
      _
    // Predicated region
    $region14: #{tpu_custom_call.1} parent=1 // pred_check
      _
    $region15: #{tpu_custom_call.1} parent=1 // pred_check_branch
      %111 = sbr.rel (0) target = $region17
    $region16: #{tpu_custom_call.1} parent=1 // pred_region
      %112 = dma.done [#allocation4], 512
    $region17: #{tpu_custom_call.1} parent=1 // pred_fallthru
      _
    %113 = vsyncpa [#allocation3], 1
    %114 = vsyncpa [#allocation4], 1

</llo_original>
